<compile_context>
chip_gen: v6e
topology: v6e:2x2x1
jax: 0.10.0
libtpu: 0.0.40
codegen_flags: <defaults>
</compile_context>

<pallas_src>
import functools

import jax
import jax.numpy as jnp
from jax.experimental import pallas as pl
from jax.experimental.pallas import tpu as pltpu

# Pad/mask value for logits: sigmoid(-1e4) == 0 exactly and the BCE term with
# target 0 is exactly 0, so masked/padded elements contribute nothing to any sum.
_NEG_PAD = -1e4


def _combine_loss_kernel(x_ref, t_ref, o_ref, *, rows_valid):
    """Processes one (bn, tr, 128) feature chunk of bn samples.

    o_ref block is (4, bn, 8, 128) and stays resident across the row-chunk axis:
      slab 0: per-sample sum(sigmoid(x) * t)   slab 1: per-sample sum(sigmoid(x))
      slab 2: per-sample sum(t)                slab 3: per-sample sum(BCE terms)
    """
    j = pl.program_id(1)

    @pl.when(j == 0)
    def _():
        o_ref[...] = jnp.zeros_like(o_ref)

    x = x_ref[...].astype(jnp.float32)                  # (bn, tr, 128)
    t = t_ref[...].astype(jnp.float32)
    bn, tr, _ = x.shape

    if rows_valid is not None:
        # Ragged-tail fallback (only compiled when no row tile divides `rows`):
        # rows >= rows_valid alias out-of-bounds data; neutralize them BEFORE any
        # transcendental sees the garbage values.
        row = jax.lax.broadcasted_iota(jnp.int32, x.shape, 1) + j * tr
        valid = row < rows_valid
        x = jnp.where(valid, x, jnp.float32(_NEG_PAD))
        t = jnp.where(valid, t, 0.0)

    # One exp per element shared by sigmoid and the stable BCE.  1+e is reused by
    # both the reciprocal and the log (cheaper than log1p); the divide is an approx
    # reciprocal refined by one Newton step (~f32-exact, fewer VALU ops).
    e = jnp.exp(-jnp.abs(x))                            # EUP
    d = 1.0 + e
    r = pl.reciprocal(d, approx=True)                   # EUP
    inv = r * (2.0 - d * r)                             # one Newton refinement step
    sig = jnp.where(x >= 0, 1.0, e) * inv               # == sigmoid(x)
    bce = jnp.maximum(x, 0.0) - x * t + jnp.log(d)      # stable BCE-with-logits

    def fold(v):                                        # (bn, tr, 128) -> (bn, 8, 128)
        if tr % 8 == 0:
            g = tr // 8
            return v if g == 1 else jnp.sum(v.reshape(bn, g, 8, 128), axis=1)
        # Tiny-sample regime (tr == full rows, < 8 or not a multiple of 8): place the
        # row sum into sublane 0 of the slab.
        s = jnp.sum(v, axis=1, keepdims=True)           # (bn, 1, 128)
        sub = jax.lax.broadcasted_iota(jnp.int32, (bn, 8, 128), 1)
        return jnp.where(sub == 0, s, 0.0)

    o_ref[0] += fold(sig * t)
    o_ref[1] += fold(sig)
    o_ref[2] += fold(t)
    o_ref[3] += fold(bce)


def _choose_tiles(n, rows, itemsize_x, itemsize_t, vmem_limit):
    """Pick (bn, tr, rows_valid): large HBM blocks per step while double-buffered
    inputs + f32 temporaries + the resident output slab fit in VMEM."""
    # Per-element VMEM: double-buffered native-dtype inputs + ~8 live f32 temporaries.
    bpe_vmem = 2 * (itemsize_x + itemsize_t) + 8 * 4
    row_bytes = 128 * bpe_vmem
    slab_bytes = 2 * 4 * 8 * 128 * 4                    # double-buffered out slab / sample
    budget = max(vmem_limit - (4 << 20), 2 << 20)       # leave compiler headroom

    per_sample = rows * row_bytes + slab_bytes
    if per_sample <= budget:
        # Whole sample(s) per step: no row chunking, no tail mask ever.
        bn = int(max(1, min(n, budget // per_sample)))
        return bn, rows, None

    # Large per-sample feature count: one sample per step, chunk the rows.
    tr_cap = (budget - slab_bytes) // row_bytes
    tr_cap = int(max(8, min(tr_cap, rows) // 8 * 8))
    if rows % 8 == 0:
        # Prefer a tile that divides rows so the ragged-tail mask is compiled out.
        floor = max(8, (tr_cap // 2) // 8 * 8)
        cand = tr_cap
        while cand >= floor:
            if rows % cand == 0:
                return 1, cand, None
            cand -= 8
    rows_valid = None if rows % tr_cap == 0 else rows
    return 1, tr_cap, rows_valid


def combine_loss(inputs, targets, alpha=1.0, beta=1.0, *, vmem_limit_bytes=None):
    """inputs (logits), targets: any shape with a leading batch dim (e.g. NCHW).
    Both are read in their native dtypes (bf16 / int8 masks cut HBM traffic)."""
    n = inputs.shape[0]
    x = inputs.reshape(n, -1)
    t = targets.reshape(n, -1)
    f = x.shape[1]

    # Lane alignment: the reshape to (n, rows, 128) is free when f % 128 == 0 (the
    # common segmentation case); otherwise pad only the few trailing lanes (padded
    # elements contribute exactly zero to every sum).
    # TODO(synk): a fully pad-free in-kernel tail mask for f % 128 != 0 would avoid
    # this one extra HBM copy for oddly-sized inputs.
    if f % 128 != 0:
        pad = 128 - f % 128
        x = jnp.pad(x, ((0, 0), (0, pad)), constant_values=_NEG_PAD)
        t = jnp.pad(t, ((0, 0), (0, pad)), constant_values=0)
    rows = x.shape[1] // 128
    x = x.reshape(n, rows, 128)
    t = t.reshape(n, rows, 128)

    if vmem_limit_bytes is None:
        try:
            cap = int(pltpu.get_tpu_info().vmem_capacity_bytes)
        except Exception:
            cap = 64 * 1024 * 1024                      # v7x per-core lower bound
        vmem_limit_bytes = min(cap * 3 // 4, 96 * 1024 * 1024)
    vmem_limit_bytes = int(vmem_limit_bytes)

    bn, tr, rows_valid = _choose_tiles(
        n, rows, jnp.dtype(x.dtype).itemsize, jnp.dtype(t.dtype).itemsize,
        vmem_limit_bytes)

    grid = (int(pl.cdiv(n, bn)), int(pl.cdiv(rows, tr)))
    kernel = functools.partial(_combine_loss_kernel, rows_valid=rows_valid)

    partials = pl.pallas_call(
        kernel,
        out_shape=jax.ShapeDtypeStruct((4, n, 8, 128), jnp.float32),
        grid_spec=pltpu.PrefetchScalarGridSpec(
            num_scalar_prefetch=0,
            grid=grid,
            in_specs=[
                pl.BlockSpec((bn, tr, 128), lambda i, j: (i, j, 0)),
                pl.BlockSpec((bn, tr, 128), lambda i, j: (i, j, 0)),
            ],
            out_specs=pl.BlockSpec((4, bn, 8, 128), lambda i, j: (0, i, 0, 0)),
        ),
        compiler_params=pltpu.CompilerParams(
            dimension_semantics=("parallel", "arbitrary"),
            vmem_limit_bytes=vmem_limit_bytes,
        ),
    )(x, t)

    # Tiny finalize in plain JAX: cross-lane reduce + dice / focal(gamma=0) combine.
    sums = jnp.sum(partials, axis=(2, 3))               # (4, n)
    inter, sig_sum, tgt_sum, bce_sum = sums[0], sums[1], sums[2], sums[3]
    dice = 2.0 * inter / (sig_sum + tgt_sum + 1e-8)
    dice_loss = 1.0 - jnp.mean(dice)
    bce_mean = jnp.sum(bce_sum) / (n * f)                # mean over ORIGINAL elements
    # FocalLoss with gamma=0: (1 - exp(-logp))**0 * logp == logp == mean BCE.
    return alpha * dice_loss + beta * bce_mean


def _reference(inputs, targets, alpha=1.0, beta=1.0):
    n = inputs.shape[0]
    x = inputs.reshape(n, -1).astype(jnp.float32)
    t = targets.reshape(n, -1).astype(jnp.float32)
    sig = jax.nn.sigmoid(x)
    inter = jnp.sum(sig * t, axis=1)
    union = jnp.sum(sig, axis=1) + jnp.sum(t, axis=1)
    dice_loss = 1.0 - jnp.mean(2.0 * inter / (union + 1e-8))
    bce = jnp.mean(jnp.maximum(x, 0.0) - x * t + jnp.log1p(jnp.exp(-jnp.abs(x))))
    return alpha * dice_loss + beta * bce


if __name__ == "__main__":
    key = jax.random.PRNGKey(0)
    k1, k2, k3, k4 = jax.random.split(key, 4)

    # 1) Small NCHW shapes consistent with a segmentation loss (f32 logits / f32 mask).
    inputs = jax.random.normal(k1, (2, 4, 16, 16), dtype=jnp.float32)   # logits
    targets = (jax.random.uniform(k2, (2, 4, 16, 16)) > 0.5).astype(jnp.float32)
    loss = jax.block_until_ready(combine_loss(inputs, targets, alpha=1.0, beta=1.0))
    ref = _reference(inputs, targets)
    assert jnp.allclose(loss, ref, atol=1e-5, rtol=1e-5), (loss, ref)

    # 2) Native bf16 logits + bf16 mask (no wrapper upcast; kernel casts in VMEM).
    loss_bf16 = jax.block_until_ready(
        combine_loss(inputs.astype(jnp.bfloat16), targets.astype(jnp.bfloat16)))
    ref_bf16 = _reference(inputs.astype(jnp.bfloat16), targets.astype(jnp.bfloat16))
    assert jnp.allclose(loss_bf16, ref_bf16, atol=1e-3, rtol=1e-3), (loss_bf16, ref_bf16)

    # 3) Force the chunked-rows path (multi-step resident accumulation) via a small
    #    VMEM cap; the divisor search picks tr=256 for rows=512 (no tail mask).
    big_in = jax.random.normal(k3, (2, 4, 128, 128), dtype=jnp.float32)
    big_tg = (jax.random.uniform(k4, (2, 4, 128, 128)) > 0.5).astype(jnp.float32)
    loss_big = jax.block_until_ready(
        combine_loss(big_in, big_tg, vmem_limit_bytes=6 * 1024 * 1024))
    ref_big = _reference(big_in, big_tg)
    assert jnp.allclose(loss_big, ref_big, atol=1e-5, rtol=1e-5), (loss_big, ref_big)

    # 4) Non-128-multiple features + rows not a multiple of 8 (lane pad + tiny fold).
    odd_in = jax.random.normal(k1, (2, 3, 10, 10), dtype=jnp.float32)
    odd_tg = (jax.random.uniform(k2, (2, 3, 10, 10)) > 0.5).astype(jnp.float32)
    loss_odd = jax.block_until_ready(combine_loss(odd_in, odd_tg))
    ref_odd = _reference(odd_in, odd_tg)
    assert jnp.allclose(loss_odd, ref_odd, atol=1e-5, rtol=1e-5), (loss_odd, ref_odd)

    print("KERNEL_OK")
</pallas_src>

<mosaic_0001>
module attributes {stable_mosaic.version = 11 : i64} {
  func.func @_combine_loss_kernel(%arg0: i32, %arg1: i32, %arg2: memref<2x8x128xf32, #tpu.memory_space<vmem>>, %arg3: memref<2x8x128xf32, #tpu.memory_space<vmem>>, %arg4: memref<4x2x8x128xf32, #tpu.memory_space<vmem>>) attributes {dimension_semantics = [#tpu.dimension_semantics<parallel>, #tpu.dimension_semantics<arbitrary>], iteration_bounds = array<i64: 1, 1>, scalar_prefetch = 0 : i64, scratch_operands = 0 : i64, tpu.core_type = #tpu.core_type<tc>, window_params = [{transform_indices = @transform_0, window_bounds = array<i64: 2, 8, 128>}, {transform_indices = @transform_1, window_bounds = array<i64: 2, 8, 128>}, {transform_indices = @transform_2, window_bounds = array<i64: 4, 2, 8, 128>}]} {
    %c0_i32 = arith.constant 0 : i32
    %0 = arith.cmpi eq, %arg1, %c0_i32 : i32
    %1 = arith.extui %0 : i1 to i32
    %c0_i32_0 = arith.constant 0 : i32
    %2 = arith.cmpi ne, %1, %c0_i32_0 : i32
    scf.if %2 {
      %cst_40 = arith.constant 0.000000e+00 : f32
      %52 = vector.broadcast %cst_40 : f32 to vector<4x2x8x128xf32>
      %c0_41 = arith.constant 0 : index
      %c0_42 = arith.constant 0 : index
      %c0_43 = arith.constant 0 : index
      %c0_44 = arith.constant 0 : index
      %53 = vector.load %arg4[%c0_41, %c0_42, %c0_43, %c0_44] : memref<4x2x8x128xf32, #tpu.memory_space<vmem>>, vector<4x2x8x128xf32>
      tpu.vector_store %arg4[%c0_41, %c0_42, %c0_43, %c0_44], %52 {strides = array<i32>} : memref<4x2x8x128xf32, #tpu.memory_space<vmem>>, vector<4x2x8x128xf32>,
    } else {
    }
    %c0 = arith.constant 0 : index
    %c0_1 = arith.constant 0 : index
    %c0_2 = arith.constant 0 : index
    %3 = vector.load %arg2[%c0, %c0_1, %c0_2] : memref<2x8x128xf32, #tpu.memory_space<vmem>>, vector<2x8x128xf32>
    %c0_3 = arith.constant 0 : index
    %c0_4 = arith.constant 0 : index
    %c0_5 = arith.constant 0 : index
    %4 = vector.load %arg3[%c0_3, %c0_4, %c0_5] : memref<2x8x128xf32, #tpu.memory_space<vmem>>, vector<2x8x128xf32>
    %5 = math.absf %3 : vector<2x8x128xf32>
    %cst = arith.constant 0.000000e+00 : f32
    %6 = vector.broadcast %cst : f32 to vector<2x8x128xf32>
    %7 = arith.subf %6, %5 : vector<2x8x128xf32>
    %8 = math.exp %7 : vector<2x8x128xf32>
    %cst_6 = arith.constant 1.000000e+00 : f32
    %9 = vector.broadcast %cst_6 : f32 to vector<2x8x128xf32>
    %10 = arith.addf %9, %8 : vector<2x8x128xf32>
    %11 = tpu.reciprocal %10 {approx = true} : vector<2x8x128xf32> -> vector<2x8x128xf32>
    %12 = arith.mulf %10, %11 : vector<2x8x128xf32>
    %cst_7 = arith.constant 2.000000e+00 : f32
    %13 = vector.broadcast %cst_7 : f32 to vector<2x8x128xf32>
    %14 = arith.subf %13, %12 : vector<2x8x128xf32>
    %15 = arith.mulf %11, %14 : vector<2x8x128xf32>
    %cst_8 = arith.constant 0.000000e+00 : f32
    %16 = vector.broadcast %cst_8 : f32 to vector<2x8x128xf32>
    %17 = arith.cmpf oge, %3, %16 : vector<2x8x128xf32>
    %cst_9 = arith.constant 1.000000e+00 : f32
    %18 = vector.broadcast %cst_9 : f32 to vector<2x8x128xf32>
    %19 = arith.select %17, %18, %8 : vector<2x8x128xi1>, vector<2x8x128xf32>
    %20 = arith.mulf %19, %15 : vector<2x8x128xf32>
    %cst_10 = arith.constant 0.000000e+00 : f32
    %21 = vector.broadcast %cst_10 : f32 to vector<2x8x128xf32>
    %22 = arith.maximumf %3, %21 : vector<2x8x128xf32>
    %23 = arith.mulf %3, %4 : vector<2x8x128xf32>
    %24 = arith.subf %22, %23 : vector<2x8x128xf32>
    %25 = math.log %10 : vector<2x8x128xf32>
    %26 = arith.addf %24, %25 : vector<2x8x128xf32>
    %c0_11 = arith.constant 0 : index
    %c0_12 = arith.constant 0 : index
    %c0_13 = arith.constant 0 : index
    %c0_14 = arith.constant 0 : index
    %27 = vector.load %arg4[%c0_11, %c0_12, %c0_13, %c0_14] : memref<4x2x8x128xf32, #tpu.memory_space<vmem>>, vector<1x2x8x128xf32>
    %28 = vector.shape_cast %27 : vector<1x2x8x128xf32> to vector<2x8x128xf32>
    %29 = arith.mulf %20, %4 : vector<2x8x128xf32>
    %30 = arith.addf %28, %29 : vector<2x8x128xf32>
    %c0_15 = arith.constant 0 : index
    %c0_16 = arith.constant 0 : index
    %c0_17 = arith.constant 0 : index
    %c0_18 = arith.constant 0 : index
    %31 = vector.load %arg4[%c0_15, %c0_16, %c0_17, %c0_18] : memref<4x2x8x128xf32, #tpu.memory_space<vmem>>, vector<1x2x8x128xf32>
    %32 = vector.shape_cast %31 : vector<1x2x8x128xf32> to vector<2x8x128xf32>
    %33 = vector.shape_cast %30 : vector<2x8x128xf32> to vector<1x2x8x128xf32>
    tpu.vector_store %arg4[%c0_15, %c0_16, %c0_17, %c0_18], %33 {strides = array<i32>} : memref<4x2x8x128xf32, #tpu.memory_space<vmem>>, vector<1x2x8x128xf32>,
    %c1 = arith.constant 1 : index
    %c0_19 = arith.constant 0 : index
    %c0_20 = arith.constant 0 : index
    %c0_21 = arith.constant 0 : index
    %34 = vector.load %arg4[%c1, %c0_19, %c0_20, %c0_21] : memref<4x2x8x128xf32, #tpu.memory_space<vmem>>, vector<1x2x8x128xf32>
    %35 = vector.shape_cast %34 : vector<1x2x8x128xf32> to vector<2x8x128xf32>
    %36 = arith.addf %35, %20 : vector<2x8x128xf32>
    %c1_22 = arith.constant 1 : index
    %c0_23 = arith.constant 0 : index
    %c0_24 = arith.constant 0 : index
    %c0_25 = arith.constant 0 : index
    %37 = vector.load %arg4[%c1_22, %c0_23, %c0_24, %c0_25] : memref<4x2x8x128xf32, #tpu.memory_space<vmem>>, vector<1x2x8x128xf32>
    %38 = vector.shape_cast %37 : vector<1x2x8x128xf32> to vector<2x8x128xf32>
    %39 = vector.shape_cast %36 : vector<2x8x128xf32> to vector<1x2x8x128xf32>
    tpu.vector_store %arg4[%c1_22, %c0_23, %c0_24, %c0_25], %39 {strides = array<i32>} : memref<4x2x8x128xf32, #tpu.memory_space<vmem>>, vector<1x2x8x128xf32>,
    %c2 = arith.constant 2 : index
    %c0_26 = arith.constant 0 : index
    %c0_27 = arith.constant 0 : index
    %c0_28 = arith.constant 0 : index
    %40 = vector.load %arg4[%c2, %c0_26, %c0_27, %c0_28] : memref<4x2x8x128xf32, #tpu.memory_space<vmem>>, vector<1x2x8x128xf32>
    %41 = vector.shape_cast %40 : vector<1x2x8x128xf32> to vector<2x8x128xf32>
    %42 = arith.addf %41, %4 : vector<2x8x128xf32>
    %c2_29 = arith.constant 2 : index
    %c0_30 = arith.constant 0 : index
    %c0_31 = arith.constant 0 : index
    %c0_32 = arith.constant 0 : index
    %43 = vector.load %arg4[%c2_29, %c0_30, %c0_31, %c0_32] : memref<4x2x8x128xf32, #tpu.memory_space<vmem>>, vector<1x2x8x128xf32>
    %44 = vector.shape_cast %43 : vector<1x2x8x128xf32> to vector<2x8x128xf32>
    %45 = vector.shape_cast %42 : vector<2x8x128xf32> to vector<1x2x8x128xf32>
    tpu.vector_store %arg4[%c2_29, %c0_30, %c0_31, %c0_32], %45 {strides = array<i32>} : memref<4x2x8x128xf32, #tpu.memory_space<vmem>>, vector<1x2x8x128xf32>,
    %c3 = arith.constant 3 : index
    %c0_33 = arith.constant 0 : index
    %c0_34 = arith.constant 0 : index
    %c0_35 = arith.constant 0 : index
    %46 = vector.load %arg4[%c3, %c0_33, %c0_34, %c0_35] : memref<4x2x8x128xf32, #tpu.memory_space<vmem>>, vector<1x2x8x128xf32>
    %47 = vector.shape_cast %46 : vector<1x2x8x128xf32> to vector<2x8x128xf32>
    %48 = arith.addf %47, %26 : vector<2x8x128xf32>
    %c3_36 = arith.constant 3 : index
    %c0_37 = arith.constant 0 : index
    %c0_38 = arith.constant 0 : index
    %c0_39 = arith.constant 0 : index
    %49 = vector.load %arg4[%c3_36, %c0_37, %c0_38, %c0_39] : memref<4x2x8x128xf32, #tpu.memory_space<vmem>>, vector<1x2x8x128xf32>
    %50 = vector.shape_cast %49 : vector<1x2x8x128xf32> to vector<2x8x128xf32>
    %51 = vector.shape_cast %48 : vector<2x8x128xf32> to vector<1x2x8x128xf32>
    tpu.vector_store %arg4[%c3_36, %c0_37, %c0_38, %c0_39], %51 {strides = array<i32>} : memref<4x2x8x128xf32, #tpu.memory_space<vmem>>, vector<1x2x8x128xf32>,
    return
  }
  func.func @transform_0(%arg0: i32, %arg1: i32) -> (i32, i32, i32) {
    %c0_i32 = arith.constant 0 : i32
    %c0_i32_0 = arith.constant 0 : i32
    return %arg0, %arg1, %c0_i32 : i32, i32, i32
  }
  func.func @transform_1(%arg0: i32, %arg1: i32) -> (i32, i32, i32) {
    %c0_i32 = arith.constant 0 : i32
    %c0_i32_0 = arith.constant 0 : i32
    return %arg0, %arg1, %c0_i32 : i32, i32, i32
  }
  func.func @transform_2(%arg0: i32, %arg1: i32) -> (i32, i32, i32, i32) {
    %c0_i32 = arith.constant 0 : i32
    %c0_i32_0 = arith.constant 0 : i32
    %c0_i32_1 = arith.constant 0 : i32
    %c0_i32_2 = arith.constant 0 : i32
    return %c0_i32, %arg0, %c0_i32_0, %c0_i32_1 : i32, i32, i32, i32
  }
}

</mosaic_0001>

<llo_original>
// kernel: tpu_custom_call.1
$region0: #{tpu_custom_call.1}
  #allocation0 [shape = 'u32[]', space=smem, size = 0x4, offset = 0x4, fixed_abs, tag = 'smem constant byte address 0x4 - core index']
  #allocation1 [shape = 'u32[144,128]{1,0:T(1,128)}', space=vmem, size = 0x12000, scoped, tag = 'internal scratch']
  %s0 = inlined_call_operand.hbm [shape: f32[2,8,128], index: 0, kind: input, shape index: {}]
  %s1 = inlined_call_operand.hbm [shape: f32[2,8,128], index: 1, kind: input, shape index: {}]
  %s2 = inlined_call_operand.hbm [shape: f32[4,2,8,128], index: 2, kind: output, shape index: {}]
  %s3 = sld [smem:[#allocation0]]
  $region30: #{tpu_custom_call.1} parent=0
    _
  %s5 = ssub.s32 1, %s3
  %s6 = scalar_select 0, %s5, %s3
  $region1: #{tpu_custom_call.1} parent=0
    #allocation2 [shape = 'u8[8192]{0}', space=vmem, size = 0x2000, scoped, tag = 'input window, operand 0, single buffered']
    #allocation3 [shape = 's32[1]{0}', space=sflag, size = 0x4, scoped, tag = 'scoped memory for tpu_custom_call.1']
    #allocation4 [shape = 's32[1]{0}', space=sflag, size = 0x4, scoped, tag = 'scoped memory for tpu_custom_call.1']
    #allocation5 [shape = 'u8[8192]{0}', space=vmem, size = 0x2000, scoped, tag = 'input window, operand 1, single buffered']
    #allocation6 [shape = 's32[1]{0}', space=sflag, size = 0x4, scoped, tag = 'scoped memory for tpu_custom_call.1']
    #allocation7 [shape = 'u8[32768]{0}', space=vmem, size = 0x8000, scoped, tag = 'output window, operand 0, single buffered']
    %7 = vsyncpa [#allocation3], 0
    %8 = vsyncpa [#allocation6], 0
    %9 = vsyncpa [#allocation4], 0
    // Predicated region
    $region2: #{tpu_custom_call.1} parent=1 // pred_check
      _
    $region3: #{tpu_custom_call.1} parent=1 // pred_check_branch
      %11 = sbr.rel (0) target = $region5
    $region4: #{tpu_custom_call.1} parent=1 // pred_region
      %s13 = ssub.s32 256, 256
      %14 = vsyncadd [#allocation3], %s13
      %s15 = sshll.u32 [#allocation2], 4
      %s16 = int_to_ptr.vmem [resolvable:$true] %s15
      %21 = dma.hbm_to_vmem [thread:$0]  %s0, 256, %s16, [#allocation3], 128, 128, 8
    $region5: #{tpu_custom_call.1} parent=1 // pred_fallthru
      _
    // Predicated region
    $region6: #{tpu_custom_call.1} parent=1 // pred_check
      _
    $region7: #{tpu_custom_call.1} parent=1 // pred_check_branch
      %23 = sbr.rel (0) target = $region9
    $region8: #{tpu_custom_call.1} parent=1 // pred_region
      %s25 = ssub.s32 256, 256
      %26 = vsyncadd [#allocation6], %s25
      %s27 = sshll.u32 [#allocation5], 4
      %s28 = int_to_ptr.vmem [resolvable:$true] %s27
      %33 = dma.hbm_to_vmem [thread:$0]  %s1, 256, %s28, [#allocation6], 128, 128, 8
    $region9: #{tpu_custom_call.1} parent=1 // pred_fallthru
      _
    // Predicated region
    $region10: #{tpu_custom_call.1} parent=1 // pred_check
      _
    $region11: #{tpu_custom_call.1} parent=1 // pred_check_branch
      %35 = sbr.rel (0) target = $region13
    $region12: #{tpu_custom_call.1} parent=1 // pred_region
      %36 = dma.done [#allocation3], 256
    $region13: #{tpu_custom_call.1} parent=1 // pred_fallthru
      _
    // Predicated region
    $region14: #{tpu_custom_call.1} parent=1 // pred_check
      _
    $region15: #{tpu_custom_call.1} parent=1 // pred_check_branch
      %38 = sbr.rel (0) target = $region17
    $region16: #{tpu_custom_call.1} parent=1 // pred_region
      %39 = dma.done [#allocation6], 256
    $region17: #{tpu_custom_call.1} parent=1 // pred_fallthru
      _
    %p40 = scmp.eq.s32.totalorder 0, 0
    // Predicated region
    $region18: #{tpu_custom_call.1} parent=1 // pred_check
      %p41 = pneg %p40
    $region19: #{tpu_custom_call.1} parent=1 // pred_check_branch
      %43 = sbr.rel (%p41) target = $region21
    $region20: #{tpu_custom_call.1} parent=1 // pred_region
      %44 = vst [vmem:[#allocation7] sm:$0xff] 0.0
      %45 = vst [vmem:[#allocation7 + $0x8] sm:$0xff] 0.0
      %46 = vst [vmem:[#allocation7 + $0x10] sm:$0xff] 0.0
      %47 = vst [vmem:[#allocation7 + $0x18] sm:$0xff] 0.0
      %48 = vst [vmem:[#allocation7 + $0x20] sm:$0xff] 0.0
      %49 = vst [vmem:[#allocation7 + $0x28] sm:$0xff] 0.0
      %50 = vst [vmem:[#allocation7 + $0x30] sm:$0xff] 0.0
      %51 = vst [vmem:[#allocation7 + $0x38] sm:$0xff] 0.0
    $region21: #{tpu_custom_call.1} parent=1 // pred_fallthru
      _
    %v52 = vld [vmem:[#allocation2] sm:$0xff]
    %v53 = vld [vmem:[#allocation2 + $0x8] sm:$0xff]
    %v54 = vld [vmem:[#allocation5] sm:$0xff]
    %v55 = vld [vmem:[#allocation5 + $0x8] sm:$0xff]
    %v56 = vand.u32 2147483647, %v52
    %v57 = vand.u32 2147483647, %v53
    %v58 = vsub.f32 0.0, %v56
    %v59 = vsub.f32 0.0, %v57
    %v60 = vmul.f32 %v58, 1.442695
    %v61 = vpow.pop %v60
    %v62 = vmul.f32 %v59, 1.442695
    %v63 = vpow.pop %v62
    %v64 = vadd.f32 %v61, 1.0
    %v65 = vadd.f32 %v63, 1.0
    %v66 = vrcp.pop %v64
    %v67 = vrcp.pop %v65
    %v68 = vmul.f32 %v64, %v66
    %v69 = vmul.f32 %v65, %v67
    %v70 = vsub.f32 2.0, %v68
    %v71 = vsub.f32 2.0, %v69
    %v72 = vmul.f32 %v66, %v70
    %v73 = vmul.f32 %v67, %v71
    %vm74 = vcmp.ge.f32.partialorder %v52, 0.0
    %vm75 = vcmp.ge.f32.partialorder %v53, 0.0
    %v76 = vsel %vm74, 1.0, %v61
    %v77 = vsel %vm75, 1.0, %v63
    %v78 = vmul.f32 %v76, %v72
    %v79 = vmul.f32 %v77, %v73
    %v80 = vmax.f32 %v52, 0.0
    %v81 = vmax.f32 %v53, 0.0
    %v82 = vmul.f32 %v52, %v54
    %v83 = vmul.f32 %v53, %v55
    %v84 = vsub.f32 %v80, %v82
    %v85 = vsub.f32 %v81, %v83
    %v86 = vlog2.pop %v64
    %v87 = vmul.f32 %v86, 0.6931472
    %v88 = vlog2.pop %v65
    %v89 = vmul.f32 %v88, 0.6931472
    %v90 = vadd.f32 %v84, %v87
    %v91 = vadd.f32 %v85, %v89
    %v92 = vld [vmem:[#allocation7] sm:$0xff]
    %v93 = vld [vmem:[#allocation7 + $0x8] sm:$0xff]
    %v94 = vmul.f32 %v78, %v54
    %v95 = vmul.f32 %v79, %v55
    %v96 = vadd.f32 %v92, %v94
    %v97 = vadd.f32 %v93, %v95
    %98 = vst [vmem:[#allocation7] sm:$0xff] %v96
    %99 = vst [vmem:[#allocation7 + $0x8] sm:$0xff] %v97
    %s100 = scalar_lea.vmem [#allocation7], 16
    %v101 = vld [vmem:[%s100] sm:$0xff]
    %v102 = vld [vmem:[%s100 + $0x8] sm:$0xff]
    %v103 = vadd.f32 %v101, %v78
    %v104 = vadd.f32 %v102, %v79
    %105 = vst [vmem:[%s100] sm:$0xff] %v103
    %106 = vst [vmem:[%s100 + $0x8] sm:$0xff] %v104
    %s107 = scalar_lea.vmem [#allocation7], 32
    %v108 = vld [vmem:[%s107] sm:$0xff]
    %v109 = vld [vmem:[%s107 + $0x8] sm:$0xff]
    %v110 = vadd.f32 %v108, %v54
    %v111 = vadd.f32 %v109, %v55
    %112 = vst [vmem:[%s107] sm:$0xff] %v110
    %113 = vst [vmem:[%s107 + $0x8] sm:$0xff] %v111
    %s114 = scalar_lea.vmem [#allocation7], 48
    %v115 = vld [vmem:[%s114] sm:$0xff]
    %v116 = vld [vmem:[%s114 + $0x8] sm:$0xff]
    %v117 = vadd.f32 %v115, %v90
    %v118 = vadd.f32 %v116, %v91
    %119 = vst [vmem:[%s114] sm:$0xff] %v117
    %120 = vst [vmem:[%s114 + $0x8] sm:$0xff] %v118
    // Predicated region
    $region22: #{tpu_custom_call.1} parent=1 // pred_check
      _
    $region23: #{tpu_custom_call.1} parent=1 // pred_check_branch
      %122 = sbr.rel (0) target = $region25
    $region24: #{tpu_custom_call.1} parent=1 // pred_region
      %s124 = ssub.s32 1024, 1024
      %125 = vsyncadd [#allocation4], %s124
      %s126 = sshll.u32 [#allocation7], 4
      %s127 = int_to_ptr.vmem [resolvable:$true] %s126
      %132 = dma.vmem_to_hbm [thread:$0]  %s127, 1024, %s2, [#allocation4], 128, 128, 8
    $region25: #{tpu_custom_call.1} parent=1 // pred_fallthru
      _
    // Predicated region
    $region26: #{tpu_custom_call.1} parent=1 // pred_check
      _
    $region27: #{tpu_custom_call.1} parent=1 // pred_check_branch
      %134 = sbr.rel (0) target = $region29
    $region28: #{tpu_custom_call.1} parent=1 // pred_region
      %135 = dma.done [#allocation4], 1024
    $region29: #{tpu_custom_call.1} parent=1 // pred_fallthru
      _
    %136 = vsyncpa [#allocation3], 1
    %137 = vsyncpa [#allocation6], 1
    %138 = vsyncpa [#allocation4], 1

</llo_original>
